<compile_context>
chip_gen: v7x
topology: tpu7x:2x2x1
jax: 0.10.0
libtpu: 0.0.40
codegen_flags: <defaults>
</compile_context>

<pallas_src>
import functools

import jax
import jax.numpy as jnp
from jax.experimental import pallas as pl
from jax.experimental.pallas import tpu as pltpu

_V_TILE_MAX = 2048   # vocab rows per table tile when streaming a large table
_ROW_TARGET = 512    # target token rows per grid step


def _round_up(x, m):
    return (x + m - 1) // m * m


def _cdiv(a, b):
    return -(-a // b)


def pad_embedding_table(table):
    """Pad the vocab axis ONCE, outside the jitted forward.

    Padded to a multiple of 256 (v6e/v7x MXU depth); if larger than one vocab
    tile, further padded to a multiple of the tile so every streamed table
    block is fully backed by real (zero-filled) HBM data.
    """
    vocab, _ = table.shape
    v_pad = _round_up(vocab, 256)
    if v_pad > _V_TILE_MAX:
        v_pad = _round_up(v_pad, _V_TILE_MAX)
    if v_pad != vocab:
        table = jnp.pad(table, ((0, v_pad - vocab), (0, 0)))
    return table


def _embed_dropout_kernel(ids_ref, table_ref, mask_ref, out_ref, acc_ref):
    # ids_ref  : (Bt, T, 1)  int32  token ids for this (batch, time) block
    # table_ref: (v_tile, d)        one vocab tile of the embedding table
    # mask_ref : (Bt, 1, d)  f32    variational-dropout mask rows (per batch)
    # out_ref  : (Bt, T, d)
    # acc_ref  : (Bt*T, d)   f32    accumulator across vocab tiles
    k = pl.program_id(2)
    bt, t, _ = ids_ref.shape
    v_tile, d = table_ref.shape

    @pl.when(k == 0)
    def _():
        acc_ref[...] = jnp.zeros_like(acc_ref)

    # One-hot gather on the MXU. The iota is a single (1, v_tile) row,
    # broadcast inside the compare; at most one 1.0 per token row, so the
    # f32-accumulated matmul is an exact gather.
    ids = ids_ref[...].reshape(bt * t, 1)
    iota = jax.lax.broadcasted_iota(jnp.int32, (1, v_tile), 1) + k * v_tile
    onehot = (ids == iota).astype(table_ref.dtype)              # (Bt*T, v_tile)
    acc_ref[...] += jnp.dot(onehot, table_ref[...],
                            preferred_element_type=jnp.float32)

    @pl.when(k == pl.num_programs(2) - 1)
    def _():
        emb = acc_ref[...].reshape(bt, t, d)                    # f32
        out_ref[...] = (emb * mask_ref[...]).astype(out_ref.dtype)


@functools.partial(jax.jit, static_argnames=("out_dtype",))
def embedding_layer_forward(x, table_padded, mask, *, out_dtype=None):
    """x: (batch, seq) int ids; table_padded: output of pad_embedding_table;
    mask: (batch, d) variational-dropout mask (f32)."""
    batch, seq = x.shape
    v_pad, d = table_padded.shape
    out_dtype = table_padded.dtype if out_dtype is None else jnp.dtype(out_dtype)

    # ---- static tile selection -------------------------------------------
    v_tile = min(v_pad, _V_TILE_MAX)
    n_k = v_pad // v_tile                          # exact by construction

    # Time tile: multiple of 8 (sublane), <= _ROW_TARGET, sized to minimize
    # trailing-block waste. No seq padding: Pallas clips the partial block.
    n_t = max(1, _cdiv(seq, _ROW_TARGET))
    t = _round_up(_cdiv(seq, n_t), 8)
    n_t = _cdiv(seq, t)

    # Batch tile: raise per-step rows toward _ROW_TARGET for short sequences,
    # but keep >= 2 grid steps along a "parallel" axis so both v7x TCs work.
    bt = max(1, min(batch, _ROW_TARGET // t))
    if n_t == 1 and batch >= 2:
        bt = max(1, min(bt, batch // 2))
    n_b = _cdiv(batch, bt)

    ids = x.astype(jnp.int32)[:, :, None]           # (batch, seq, 1)
    mask3 = mask.astype(jnp.float32)[:, None, :]    # (batch, 1, d), keep f32

    # ---- explicit VMEM budget (capped at v7x's 64 MiB physical) -----------
    t_item = jnp.dtype(table_padded.dtype).itemsize
    o_item = jnp.dtype(out_dtype).itemsize
    rows = bt * t
    table_bufs = 1 if n_k == 1 else 2
    vmem_bytes = (
        table_bufs * v_tile * d * t_item        # resident / streamed table
        + 2 * rows * d * o_item                 # double-buffered output blocks
        + 2 * rows * 128 * 4                    # ids blocks (lane-padded)
        + 2 * bt * 8 * d * 4                    # mask blocks (sublane-padded)
        + rows * d * 4                          # f32 accumulator scratch
        + 2 * rows * v_tile * t_item            # one-hot temporaries
        + (4 << 20)                             # headroom
    )
    vmem_limit = int(min(max(vmem_bytes, 16 << 20), 64 << 20))

    # Constant-index table tile is fetched once -> single-buffer it when the
    # whole table is one tile (halves its resident VMEM footprint).
    if n_k == 1:
        table_spec = pl.BlockSpec((v_tile, d), lambda b, j, k: (k, 0),
                                  pipeline_mode=pl.Buffered(1))
    else:
        table_spec = pl.BlockSpec((v_tile, d), lambda b, j, k: (k, 0))

    return pl.pallas_call(
        _embed_dropout_kernel,
        out_shape=jax.ShapeDtypeStruct((batch, seq, d), out_dtype),
        grid_spec=pltpu.PrefetchScalarGridSpec(
            num_scalar_prefetch=0,
            grid=(n_b, n_t, n_k),
            in_specs=[
                pl.BlockSpec((bt, t, 1), lambda b, j, k: (b, j, 0)),
                table_spec,
                pl.BlockSpec((bt, 1, d), lambda b, j, k: (b, 0, 0)),
            ],
            out_specs=pl.BlockSpec((bt, t, d), lambda b, j, k: (b, j, 0)),
            scratch_shapes=[pltpu.VMEM((bt * t, d), jnp.float32)],
        ),
        compiler_params=pltpu.CompilerParams(
            dimension_semantics=("parallel", "parallel", "arbitrary"),
            vmem_limit_bytes=vmem_limit),
    )(ids, table_padded, mask3)


def make_variational_dropout_mask(key, batch, d, p, training):
    """Matches VariationalDropout: one (batch, d) mask, scaled by 1/(1-p)."""
    if not training or p == 0.0:
        return jnp.ones((batch, d), jnp.float32)
    keep = jax.random.bernoulli(key, 1.0 - p, (batch, d))
    return keep.astype(jnp.float32) / (1.0 - p)


if __name__ == "__main__":
    # Small shapes consistent with the module's forward: x is [batch, seq].
    batch, seq = 2, 8
    vocab_size, vector_size = 64, 128
    dropout_p = 0.5
    training = True

    key = jax.random.PRNGKey(0)
    k_ids, k_table, k_mask = jax.random.split(key, 3)

    # Deterministic "parameters" (nn.Embedding weight) and inputs.
    table = jax.random.normal(k_table, (vocab_size, vector_size), jnp.float32)
    x = jax.random.randint(k_ids, (batch, seq), 0, vocab_size, jnp.int32)
    mask = make_variational_dropout_mask(
        k_mask, batch, vector_size, dropout_p, training)

    # Vocab padding happens once here, OUTSIDE the jitted forward.
    table_p = pad_embedding_table(table)

    out = embedding_layer_forward(x, table_p, mask)
    out = jax.block_until_ready(out)

    # Pure-JAX reference: embedding lookup, then broadcast mask over timesteps.
    ref = table[x] * mask[:, None, :]
    assert out.shape == (batch, seq, vector_size)
    assert jnp.allclose(out, ref, atol=1e-6), "mismatch vs reference"

    print("KERNEL_OK")
</pallas_src>

<mosaic_0001>
module attributes {stable_mosaic.version = 11 : i64} {
  func.func @_embed_dropout_kernel(%arg0: i32, %arg1: i32, %arg2: i32, %arg3: memref<1x8x1xi32, #tpu.memory_space<vmem>>, %arg4: memref<256x128xf32, #tpu.memory_space<vmem>>, %arg5: memref<1x1x128xf32, #tpu.memory_space<vmem>>, %arg6: memref<1x8x128xf32, #tpu.memory_space<vmem>>, %arg7: memref<8x128xf32, #tpu.memory_space<vmem>>) attributes {dimension_semantics = [#tpu.dimension_semantics<parallel>, #tpu.dimension_semantics<parallel>, #tpu.dimension_semantics<arbitrary>], iteration_bounds = array<i64: 2, 1, 1>, scalar_prefetch = 0 : i64, scratch_operands = 1 : i64, tpu.core_type = #tpu.core_type<tc>, window_params = [{transform_indices = @transform_0, window_bounds = array<i64: 1, 8, 1>}, {pipeline_mode = #tpu.pipeline_mode<synchronous>, transform_indices = @transform_1, window_bounds = array<i64: 256, 128>}, {transform_indices = @transform_2, window_bounds = array<i64: 1, 1, 128>}, {transform_indices = @transform_3, window_bounds = array<i64: 1, 8, 128>}]} {
    %c0_i32 = arith.constant 0 : i32
    %0 = arith.cmpi eq, %arg2, %c0_i32 : i32
    %1 = arith.extui %0 : i1 to i32
    %c0_i32_0 = arith.constant 0 : i32
    %2 = arith.cmpi ne, %1, %c0_i32_0 : i32
    scf.if %2 {
      %cst_11 = arith.constant 0.000000e+00 : f32
      %22 = vector.broadcast %cst_11 : f32 to vector<8x128xf32>
      %c0_12 = arith.constant 0 : index
      %c0_13 = arith.constant 0 : index
      %23 = vector.load %arg7[%c0_12, %c0_13] : memref<8x128xf32, #tpu.memory_space<vmem>>, vector<8x128xf32>
      tpu.vector_store %arg7[%c0_12, %c0_13], %22 {strides = array<i32>} : memref<8x128xf32, #tpu.memory_space<vmem>>, vector<8x128xf32>,
    } else {
    }
    %c0 = arith.constant 0 : index
    %c0_1 = arith.constant 0 : index
    %c0_2 = arith.constant 0 : index
    %3 = vector.load %arg3[%c0, %c0_1, %c0_2] : memref<1x8x1xi32, #tpu.memory_space<vmem>>, vector<1x8x1xi32>
    %4 = vector.shape_cast %3 : vector<1x8x1xi32> to vector<8x1xi32>
    %5 = tpu.iota {dimensions = array<i32: 1>} : vector<1x256xi32>
    %c256_i32 = arith.constant 256 : i32
    %6 = arith.muli %arg2, %c256_i32 : i32
    %7 = vector.broadcast %6 : i32 to vector<1x256xi32>
    %8 = arith.addi %5, %7 : vector<1x256xi32>
    %9 = vector.broadcast %4 : vector<8x1xi32> to vector<8x256xi32>
    %10 = vector.broadcast %8 : vector<1x256xi32> to vector<8x256xi32>
    %11 = arith.cmpi eq, %9, %10 : vector<8x256xi32>
    %12 = arith.extui %11 : vector<8x256xi1> to vector<8x256xi32>
    %13 = arith.sitofp %12 : vector<8x256xi32> to vector<8x256xf32>
    %c0_3 = arith.constant 0 : index
    %c0_4 = arith.constant 0 : index
    %14 = vector.load %arg7[%c0_3, %c0_4] : memref<8x128xf32, #tpu.memory_space<vmem>>, vector<8x128xf32>
    %c0_5 = arith.constant 0 : index
    %c0_6 = arith.constant 0 : index
    %15 = vector.load %arg4[%c0_5, %c0_6] : memref<256x128xf32, #tpu.memory_space<vmem>>, vector<256x128xf32>
    %cst = arith.constant dense<0.000000e+00> : vector<8x128xf32>
    %16 = tpu.matmul %13, %15, %cst {dimension_numbers = #tpu.dot_dimension_numbers<[1], [0], [0], [1], [0, 0, 1, 1], [], []>} : vector<8x256xf32>, vector<256x128xf32>, vector<8x128xf32> -> vector<8x128xf32>
    %17 = arith.addf %14, %16 : vector<8x128xf32>
    %c0_7 = arith.constant 0 : index
    %c0_8 = arith.constant 0 : index
    %18 = vector.load %arg7[%c0_7, %c0_8] : memref<8x128xf32, #tpu.memory_space<vmem>>, vector<8x128xf32>
    tpu.vector_store %arg7[%c0_7, %c0_8], %17 {strides = array<i32>} : memref<8x128xf32, #tpu.memory_space<vmem>>, vector<8x128xf32>,
    %c0_i32_9 = arith.constant 0 : i32
    %19 = arith.cmpi eq, %arg2, %c0_i32_9 : i32
    %20 = arith.extui %19 : i1 to i32
    %c0_i32_10 = arith.constant 0 : i32
    %21 = arith.cmpi ne, %20, %c0_i32_10 : i32
    scf.if %21 {
      %c0_11 = arith.constant 0 : index
      %c0_12 = arith.constant 0 : index
      %22 = vector.load %arg7[%c0_11, %c0_12] : memref<8x128xf32, #tpu.memory_space<vmem>>, vector<8x128xf32>
      %23 = vector.shape_cast %22 : vector<8x128xf32> to vector<1x8x128xf32>
      %c0_13 = arith.constant 0 : index
      %c0_14 = arith.constant 0 : index
      %c0_15 = arith.constant 0 : index
      %24 = vector.load %arg5[%c0_13, %c0_14, %c0_15] : memref<1x1x128xf32, #tpu.memory_space<vmem>>, vector<1x1x128xf32>
      %25 = vector.broadcast %24 : vector<1x1x128xf32> to vector<1x8x128xf32>
      %26 = arith.mulf %23, %25 : vector<1x8x128xf32>
      %c0_16 = arith.constant 0 : index
      %c0_17 = arith.constant 0 : index
      %c0_18 = arith.constant 0 : index
      %27 = vector.load %arg6[%c0_16, %c0_17, %c0_18] : memref<1x8x128xf32, #tpu.memory_space<vmem>>, vector<1x8x128xf32>
      tpu.vector_store %arg6[%c0_16, %c0_17, %c0_18], %26 {strides = array<i32>} : memref<1x8x128xf32, #tpu.memory_space<vmem>>, vector<1x8x128xf32>,
    } else {
    }
    return
  }
  func.func @transform_0(%arg0: i32, %arg1: i32, %arg2: i32) -> (i32, i32, i32) {
    %c0_i32 = arith.constant 0 : i32
    %c0_i32_0 = arith.constant 0 : i32
    return %arg0, %arg1, %c0_i32 : i32, i32, i32
  }
  func.func @transform_1(%arg0: i32, %arg1: i32, %arg2: i32) -> (i32, i32) {
    %c0_i32 = arith.constant 0 : i32
    %c0_i32_0 = arith.constant 0 : i32
    return %arg2, %c0_i32 : i32, i32
  }
  func.func @transform_2(%arg0: i32, %arg1: i32, %arg2: i32) -> (i32, i32, i32) {
    %c0_i32 = arith.constant 0 : i32
    %c0_i32_0 = arith.constant 0 : i32
    %c0_i32_1 = arith.constant 0 : i32
    return %arg0, %c0_i32, %c0_i32_0 : i32, i32, i32
  }
  func.func @transform_3(%arg0: i32, %arg1: i32, %arg2: i32) -> (i32, i32, i32) {
    %c0_i32 = arith.constant 0 : i32
    %c0_i32_0 = arith.constant 0 : i32
    return %arg0, %arg1, %c0_i32 : i32, i32, i32
  }
}

</mosaic_0001>

<llo_original>
// kernel: embedding_layer_forward.1
$region0: #{embedding_layer_forward.1}
  #allocation0 [shape = 'u32[]', space=smem, size = 0x4, offset = 0x4, fixed_abs, tag = 'smem constant byte address 0x4 - core index']
  #allocation1 [shape = 'u32[144,128]{1,0:T(1,128)}', space=vmem, size = 0x12000, scoped, tag = 'internal scratch']
  #allocation2 [shape = 'f32[8,128]{1,0:T(8,128)}', space=vmem, size = 0x1000, scoped, tag = 'scratch operand']
  %s0 = inlined_call_operand.vmem [shape: s32[2,8,1], index: 0, kind: input, shape index: {}]
  %s1 = inlined_call_operand.hbm [shape: f32[256,128], index: 1, kind: input, shape index: {}]
  %s2 = inlined_call_operand.vmem [shape: f32[2,1,128], index: 2, kind: input, shape index: {}]
  %s3 = inlined_call_operand.hbm [shape: f32[2,8,128], index: 3, kind: output, shape index: {}]
  %s4 = sld [smem:[#allocation0]]
  $region57: #{embedding_layer_forward.1} parent=0
    _
  %s6 = ssub.s32 1, %s4
  %s7 = scalar_select 0, %s6, %s4
  $region1: #{embedding_layer_forward.1} parent=0
    #allocation3 [shape = 'u8[131072]{0}', space=vmem, size = 0x20000, scoped, tag = 'input window, operand 1, single buffered']
    #allocation4 [shape = 's32[2]{0}', space=sflag, size = 0x8, scoped, tag = 'scoped memory for embedding_layer_forward.1']
    #allocation5 [shape = 's32[2]{0}', space=sflag, size = 0x8, scoped, tag = 'scoped memory for embedding_layer_forward.1']
    #allocation6 [shape = 'u8[8192]{0}', space=vmem, size = 0x2000, scoped, tag = 'output window, operand 0']
    %8 = vsyncpa [#allocation4], 0
    %9 = vsyncpa [#allocation5], 0
    %s10 = scalar_lea.sflag [#allocation5], 1
    %11 = vsyncpa %s10, 0
    loop: start=0, step=1, limit=4
    $region2: #{embedding_layer_forward.1} parent=1 // loop_pre_header
      _
    $region3: #{embedding_layer_forward.1} parent=1 // loop_header
      %s13 = sphi 0, %s17
      %p14 = scmp.ge.s32.totalorder %s13, 4
      %s20 = sphi 0, %s39
      %s21 = sphi 0, %s35
      %s22 = sphi 0, %s31
      %s23 = sphi 0, %s20
      %s24 = sphi 0, %s21
      %s25 = sphi 0, %s22
      %s26 = sphi 0, %s23
      %s27 = sphi 0, %s24
      %s28 = sphi 0, %s25
      %s44 = sphi 0, %s46
      %s47 = sphi 0, %s44
      %s48 = sphi 0, %s47
      %s64 = sphi 0, %s48
      %s70 = sphi 0, %s72
      %s73 = sphi 0, %s70
      %s74 = sphi 0, %s73
      %s90 = sphi 0, %s74
      %s96 = sphi 0, %s98
      %s99 = sphi 0, %s96
      %s100 = sphi 0, %s99
      %s116 = sphi 0, %s100
      %s124 = sphi 0, %s126
      %s127 = sphi 0, %s124
      %s128 = sphi 0, %s127
      %s144 = sphi 0, %s128
    $region4: #{embedding_layer_forward.1} parent=1 // loop_header_branch
      %16 = sbr.rel (%p14) target = $region8
    $region5: #{embedding_layer_forward.1} parent=1 // loop_body
      %s18 = ssub.s32 %s13, 1
      %s19 = ssub.s32 %s13, 2
      %s29 = sadd.s32 1, %s22
      %p30 = scmp.ge.s32.totalorder %s29, 1
      %s31 = scalar_select %p30, 0, %s29
      %s32 = sadd.s32 1, %s21
      %s33 = scalar_select %p30, %s32, %s21
      %p34 = scmp.ge.s32.totalorder %s33, 1
      %s35 = scalar_select %p34, 0, %s33
      %s36 = sadd.s32 1, %s20
      %s37 = scalar_select %p34, %s36, %s20
      %p38 = scmp.ge.s32.totalorder %s37, 2
      %s39 = scalar_select %p38, 0, %s37
      %s40 = ssub.s32 %s20, %s39
      %s41 = ssub.s32 %s21, %s35
      %s42 = sor.u32 %s40, %s41
      %p43 = scmp.eq.s32.totalorder %s42, 0
      %s45 = sadd.s32 %s44, 1
      %s46 = scalar_select %p43, %s44, %s45
      %p49 = pneg %p43
      %p50 = scmp.eq.s32.totalorder %s13, 1
      %p51 = por %p49, %p50
      %p52 = scmp.ne.s32.totalorder %s44, %s47
      %p53 = scmp.eq.s32.totalorder %s13, 0
      %p54 = por %p52, %p53
      %p55 = scmp.ne.s32.totalorder %s44, %s47
      %p56 = scmp.eq.s32.totalorder %s18, 1
      %p57 = por %p55, %p56
      %p58 = scmp.ne.s32.totalorder %s47, %s48
      %p59 = scmp.eq.s32.totalorder %s18, 0
      %p60 = por %p58, %p59
      %p61 = scmp.ne.s32.totalorder %s47, %s48
      %p62 = scmp.eq.s32.totalorder %s19, 1
      %p63 = por %p61, %p62
      %p65 = scmp.ne.s32.totalorder %s48, %s64
      %p66 = scmp.eq.s32.totalorder %s19, 0
      %p67 = por %p65, %p66
      %s68 = ssub.s32 %s22, %s31
      %p69 = scmp.eq.s32.totalorder %s68, 0
      %s71 = sadd.s32 %s70, 1
      %s72 = scalar_select %p69, %s70, %s71
      %p75 = pneg %p69
      %p76 = scmp.eq.s32.totalorder %s13, 1
      %p77 = por %p75, %p76
      %p78 = scmp.ne.s32.totalorder %s70, %s73
      %p79 = scmp.eq.s32.totalorder %s13, 0
      %p80 = por %p78, %p79
      %p81 = scmp.ne.s32.totalorder %s70, %s73
      %p82 = scmp.eq.s32.totalorder %s18, 1
      %p83 = por %p81, %p82
      %p84 = scmp.ne.s32.totalorder %s73, %s74
      %p85 = scmp.eq.s32.totalorder %s18, 0
      %p86 = por %p84, %p85
      %p87 = scmp.ne.s32.totalorder %s73, %s74
      %p88 = scmp.eq.s32.totalorder %s19, 1
      %p89 = por %p87, %p88
      %p91 = scmp.ne.s32.totalorder %s74, %s90
      %p92 = scmp.eq.s32.totalorder %s19, 0
      %p93 = por %p91, %p92
      %s94 = ssub.s32 %s20, %s39
      %p95 = scmp.eq.s32.totalorder %s94, 0
      %s97 = sadd.s32 %s96, 1
      %s98 = scalar_select %p95, %s96, %s97
      %p101 = pneg %p95
      %p102 = scmp.eq.s32.totalorder %s13, 1
      %p103 = por %p101, %p102
      %p104 = scmp.ne.s32.totalorder %s96, %s99
      %p105 = scmp.eq.s32.totalorder %s13, 0
      %p106 = por %p104, %p105
      %p107 = scmp.ne.s32.totalorder %s96, %s99
      %p108 = scmp.eq.s32.totalorder %s18, 1
      %p109 = por %p107, %p108
      %p110 = scmp.ne.s32.totalorder %s99, %s100
      %p111 = scmp.eq.s32.totalorder %s18, 0
      %p112 = por %p110, %p111
      %p113 = scmp.ne.s32.totalorder %s99, %s100
      %p114 = scmp.eq.s32.totalorder %s19, 1
      %p115 = por %p113, %p114
      %p117 = scmp.ne.s32.totalorder %s100, %s116
      %p118 = scmp.eq.s32.totalorder %s19, 0
      %p119 = por %p117, %p118
      %s120 = ssub.s32 %s20, %s39
      %s121 = ssub.s32 %s21, %s35
      %s122 = sor.u32 %s120, %s121
      %p123 = scmp.eq.s32.totalorder %s122, 0
      %s125 = sadd.s32 %s124, 1
      %s126 = scalar_select %p123, %s124, %s125
      %p129 = pneg %p123
      %p130 = scmp.eq.s32.totalorder %s13, 1
      %p131 = por %p129, %p130
      %p132 = scmp.ne.s32.totalorder %s124, %s127
      %p133 = scmp.eq.s32.totalorder %s13, 0
      %p134 = por %p132, %p133
      %p135 = scmp.ne.s32.totalorder %s124, %s127
      %p136 = scmp.eq.s32.totalorder %s18, 1
      %p137 = por %p135, %p136
      %p138 = scmp.ne.s32.totalorder %s127, %s128
      %p139 = scmp.eq.s32.totalorder %s18, 0
      %p140 = por %p138, %p139
      %p141 = scmp.ne.s32.totalorder %s127, %s128
      %p142 = scmp.eq.s32.totalorder %s19, 1
      %p143 = por %p141, %p142
      %p145 = scmp.ne.s32.totalorder %s128, %s144
      %p146 = scmp.eq.s32.totalorder %s19, 0
      %p147 = por %p145, %p146
      %p148 = scmp.le.s32.totalorder 1, %s13
      %p149 = scmp.lt.s32.totalorder %s13, 3
      %p150 = pnand %p148, %p149
      %p151 = pneg %p150
      // Predicated region
      $region9: #{embedding_layer_forward.1} parent=5 // pred_check
        _
      $region10: #{embedding_layer_forward.1} parent=5 // pred_check_branch
        %153 = sbr.rel (%p150) target = $region12
      $region11: #{embedding_layer_forward.1} parent=5 // pred_region
        %s154 = ssub.s32 %s13, 1
        // Predicated region
        $region13: #{embedding_layer_forward.1} parent=11 // pred_check
          %p155 = pneg %p86
        $region14: #{embedding_layer_forward.1} parent=11 // pred_check_branch
          %157 = sbr.rel (%p155) target = $region16
        $region15: #{embedding_layer_forward.1} parent=11 // pred_region
          %s158 = smul.u32 32, %s25
          %s160 = ssub.s32 4096, 4096
          %161 = vsyncadd [#allocation4], %s160
          %s162 = smul.addr %s158, 128
          %s163 = scalar_lea.hbm %s1, %s162
          %s164 = sshll.u32 [#allocation3], 4
          %s165 = int_to_ptr.vmem [resolvable:$true] %s164
          %170 = dma.hbm_to_vmem [thread:$0]  %s163, 4096, %s165, [#allocation4], 128, 128, 8
        $region16: #{embedding_layer_forward.1} parent=11 // pred_fallthru
          _
      $region12: #{embedding_layer_forward.1} parent=5 // pred_fallthru
        _
      %p171 = scmp.lt.s32.totalorder %s13, 2
      // Predicated region
      $region17: #{embedding_layer_forward.1} parent=5 // pred_check
        %p172 = pneg %p171
      $region18: #{embedding_layer_forward.1} parent=5 // pred_check_branch
        %174 = sbr.rel (%p172) target = $region20
      $region19: #{embedding_layer_forward.1} parent=5 // pred_region
        // Predicated region
        $region21: #{embedding_layer_forward.1} parent=19 // pred_check
          %p175 = pneg %p54
        $region22: #{embedding_layer_forward.1} parent=19 // pred_check_branch
          %177 = sbr.rel (%p175) target = $region24
        $region23: #{embedding_layer_forward.1} parent=19 // pred_region
          %p178 = scmp.lt.s32.totalorder %s20, 1
          %s179 = scalar_select %p178, %s20, 1
          %p180 = scmp.lt.s32.totalorder %s21, 0
          %s181 = scalar_select %p180, %s21, 0
          %s182 = sadd.s32 %s181, %s179
          %s183 = smul.addr %s182, 8
          %s184 = scalar_lea.vmem %s0, %s183
        $region24: #{embedding_layer_forward.1} parent=19 // pred_fallthru
          _
        // Predicated region
        $region25: #{embedding_layer_forward.1} parent=19 // pred_check
          %p185 = pneg %p106
        $region26: #{embedding_layer_forward.1} parent=19 // pred_check_branch
          %187 = sbr.rel (%p185) target = $region28
        $region27: #{embedding_layer_forward.1} parent=19 // pred_region
          %p188 = scmp.lt.s32.totalorder %s20, 1
          %s189 = scalar_select %p188, %s20, 1
          %s190 = scalar_lea.vmem %s2, %s189
        $region28: #{embedding_layer_forward.1} parent=19 // pred_fallthru
          _
      $region20: #{embedding_layer_forward.1} parent=5 // pred_fallthru
        _
      %p191 = scmp.le.s32.totalorder 1, %s13
      %p192 = scmp.lt.s32.totalorder %s13, 3
      %p193 = pnand %p191, %p192
      %p194 = pneg %p193
      // Predicated region
      $region29: #{embedding_layer_forward.1} parent=5 // pred_check
        _
      $region30: #{embedding_layer_forward.1} parent=5 // pred_check_branch
        %196 = sbr.rel (%p193) target = $region32
      $region31: #{embedding_layer_forward.1} parent=5 // pred_region
        %s197 = ssub.s32 %s13, 1
        // Predicated region
        $region33: #{embedding_layer_forward.1} parent=31 // pred_check
          %p198 = pneg %p86
        $region34: #{embedding_layer_forward.1} parent=31 // pred_check_branch
          %200 = sbr.rel (%p198) target = $region36
        $region35: #{embedding_layer_forward.1} parent=31 // pred_region
          %201 = dma.done [#allocation4], 4096
        $region36: #{embedding_layer_forward.1} parent=31 // pred_fallthru
          _
        %p202 = scmp.lt.s32.totalorder %s23, 1
        %s203 = scalar_select %p202, %s23, 1
        %p204 = scmp.lt.s32.totalorder %s24, 0
        %s205 = scalar_select %p204, %s24, 0
        %s206 = sadd.s32 %s205, %s203
        %s207 = smul.addr %s206, 8
        %s208 = scalar_lea.vmem %s0, %s207
        %p209 = pneg %p60
        %p210 = pneg %p57
        %p211 = pneg %p86
        %p212 = pneg %p83
        %p213 = scmp.lt.s32.totalorder %s23, 1
        %s214 = scalar_select %p213, %s23, 1
        %s215 = scalar_lea.vmem %s2, %s214
        %p216 = pneg %p112
        %p217 = pneg %p109
        %p218 = pneg %p140
        %p219 = pneg %p137
        %s220 = sand.u32 %s127, 1
        %s221 = scalar_lea.sflag [#allocation5], %s220
        %s222 = sand.u32 %s127, 1
        %s223 = smul.addr %s222, 8
        %s224 = scalar_lea.vmem [#allocation6], %s223
        %p225 = scmp.lt.s32.totalorder %s23, 1
        %s226 = scalar_select %p225, %s23, 1
        %p227 = scmp.lt.s32.totalorder %s24, 0
        %s228 = scalar_select %p227, %s24, 0
        %s229 = sadd.s32 %s228, %s226
        %s230 = smul.addr %s229, 8
        %s231 = scalar_lea.vmem %s0, %s230
        %s232 = smul.u32 32, %s25
        %p233 = scmp.lt.s32.totalorder %s23, 1
        %s234 = scalar_select %p233, %s23, 1
        %s235 = scalar_lea.vmem %s2, %s234
        %p236 = scmp.eq.s32.totalorder %s25, 0
        // Predicated region
        $region37: #{embedding_layer_forward.1} parent=31 // pred_check
          %p237 = pneg %p236
        $region38: #{embedding_layer_forward.1} parent=31 // pred_check_branch
          %239 = sbr.rel (%p237) target = $region40
        $region39: #{embedding_layer_forward.1} parent=31 // pred_region
          %240 = vst [vmem:[#allocation2] sm:$0xff] 0.0
        $region40: #{embedding_layer_forward.1} parent=31 // pred_fallthru
          _
        %v241 = vld [vmem:[%s231] sm:$0xff]
        %v242 = vlaneseq
        %v243 = vand.u32 %v242, 127
        %v244 = vadd.s32 %v243, 128
        %s245 = smul.u32 %s25, 256
        %v246 = vstv %s245
        %v247 = vadd.s32 %v243, %v246
        %v248 = vadd.s32 %v244, %v246
        %249 = vset.pattern.permute.xlu0 0
        %250 = vperm.xlu0 %249, %v241
        %v251 = vpop.permute.xlu0 %250
        %vm252 = vcmp.eq.s32.totalorder %v251, %v247
        %vm253 = vcmp.eq.s32.totalorder %v251, %v248
        %v254 = vsel %vm252, 1, 0
        %v255 = vsel %vm253, 1, 0
        %v256 = vcvt.s32.f32 %v254
        %v257 = vcvt.s32.f32 %v255
        %v258 = vld [vmem:[#allocation2] sm:$0xff]
        %v259 = vld [vmem:[#allocation3] sm:$0xff]
        %v260 = vld [vmem:[#allocation3 + $0x8] sm:$0xff]
        %v261 = vld [vmem:[#allocation3 + $0x10] sm:$0xff]
        %v262 = vld [vmem:[#allocation3 + $0x18] sm:$0xff]
        %v263 = vld [vmem:[#allocation3 + $0x20] sm:$0xff]
        %v264 = vld [vmem:[#allocation3 + $0x28] sm:$0xff]
        %v265 = vld [vmem:[#allocation3 + $0x30] sm:$0xff]
        %v266 = vld [vmem:[#allocation3 + $0x38] sm:$0xff]
        %v267 = vld [vmem:[#allocation3 + $0x40] sm:$0xff]
        %v268 = vld [vmem:[#allocation3 + $0x48] sm:$0xff]
        %v269 = vld [vmem:[#allocation3 + $0x50] sm:$0xff]
        %v270 = vld [vmem:[#allocation3 + $0x58] sm:$0xff]
        %v271 = vld [vmem:[#allocation3 + $0x60] sm:$0xff]
        %v272 = vld [vmem:[#allocation3 + $0x68] sm:$0xff]
        %v273 = vld [vmem:[#allocation3 + $0x70] sm:$0xff]
        %v274 = vld [vmem:[#allocation3 + $0x78] sm:$0xff]
        %v275 = vld [vmem:[#allocation3 + $0x80] sm:$0xff]
        %v276 = vld [vmem:[#allocation3 + $0x88] sm:$0xff]
        %v277 = vld [vmem:[#allocation3 + $0x90] sm:$0xff]
        %v278 = vld [vmem:[#allocation3 + $0x98] sm:$0xff]
        %v279 = vld [vmem:[#allocation3 + $0xa0] sm:$0xff]
        %v280 = vld [vmem:[#allocation3 + $0xa8] sm:$0xff]
        %v281 = vld [vmem:[#allocation3 + $0xb0] sm:$0xff]
        %v282 = vld [vmem:[#allocation3 + $0xb8] sm:$0xff]
        %v283 = vld [vmem:[#allocation3 + $0xc0] sm:$0xff]
        %v284 = vld [vmem:[#allocation3 + $0xc8] sm:$0xff]
        %v285 = vld [vmem:[#allocation3 + $0xd0] sm:$0xff]
        %v286 = vld [vmem:[#allocation3 + $0xd8] sm:$0xff]
        %v287 = vld [vmem:[#allocation3 + $0xe0] sm:$0xff]
        %v288 = vld [vmem:[#allocation3 + $0xe8] sm:$0xff]
        %v289 = vld [vmem:[#allocation3 + $0xf0] sm:$0xff]
        %v290 = vld [vmem:[#allocation3 + $0xf8] sm:$0xff]
        %291 = vmatprep.subr.mxu0 0.0
        %292 = vmatpush1.msra.mxu0 %v259
        %293 = vmatprep.subr.mxu0 0.0
        %294 = vmatpush1.msra.mxu0 %v260
        %295 = vmatprep.subr.mxu0 0.0
        %296 = vmatpush1.msra.mxu0 %v261
        %297 = vmatprep.subr.mxu0 0.0
        %298 = vmatpush1.msra.mxu0 %v262
        %299 = vmatprep.subr.mxu0 0.0
        %300 = vmatpush1.msra.mxu0 %v263
        %301 = vmatprep.subr.mxu0 0.0
        %302 = vmatpush1.msra.mxu0 %v264
        %303 = vmatprep.subr.mxu0 0.0
        %304 = vmatpush1.msra.mxu0 %v265
        %305 = vmatprep.subr.mxu0 0.0
        %306 = vmatpush1.msra.mxu0 %v266
        %307 = vmatprep.subr.mxu0 0.0
        %308 = vmatpush1.msra.mxu0 %v267
        %309 = vmatprep.subr.mxu0 0.0
        %310 = vmatpush1.msra.mxu0 %v268
        %311 = vmatprep.subr.mxu0 0.0
        %312 = vmatpush1.msra.mxu0 %v269
        %313 = vmatprep.subr.mxu0 0.0
        %314 = vmatpush1.msra.mxu0 %v270
        %315 = vmatprep.subr.mxu0 0.0
        %316 = vmatpush1.msra.mxu0 %v271
        %317 = vmatprep.subr.mxu0 0.0
        %318 = vmatpush1.msra.mxu0 %v272
        %319 = vmatprep.subr.mxu0 0.0
        %320 = vmatpush1.msra.mxu0 %v273
        %321 = vmatprep.subr.mxu0 0.0
        %322 = vmatpush1.msra.mxu0 %v274
        %323 = vmatprep.subr.mxu0 0.0
        %324 = vmatpush1.msra.mxu0 %v275
        %325 = vmatprep.subr.mxu0 0.0
        %326 = vmatpush1.msra.mxu0 %v276
        %327 = vmatprep.subr.mxu0 0.0
        %328 = vmatpush1.msra.mxu0 %v277
        %329 = vmatprep.subr.mxu0 0.0
        %330 = vmatpush1.msra.mxu0 %v278
        %331 = vmatprep.subr.mxu0 0.0
        %332 = vmatpush1.msra.mxu0 %v279
        %333 = vmatprep.subr.mxu0 0.0
        %334 = vmatpush1.msra.mxu0 %v280
        %335 = vmatprep.subr.mxu0 0.0
        %336 = vmatpush1.msra.mxu0 %v281
        %337 = vmatprep.subr.mxu0 0.0
        %338 = vmatpush1.msra.mxu0 %v282
        %339 = vmatprep.subr.mxu0 0.0
        %340 = vmatpush1.msra.mxu0 %v283
        %341 = vmatprep.subr.mxu0 0.0
        %342 = vmatpush1.msra.mxu0 %v284
        %343 = vmatprep.subr.mxu0 0.0
        %344 = vmatpush1.msra.mxu0 %v285
        %345 = vmatprep.subr.mxu0 0.0
        %346 = vmatpush1.msra.mxu0 %v286
        %347 = vmatprep.subr.mxu0 0.0
        %348 = vmatpush1.msra.mxu0 %v287
        %349 = vmatprep.subr.mxu0 0.0
        %350 = vmatpush1.msra.mxu0 %v288
        %351 = vmatprep.subr.mxu0 0.0
        %352 = vmatpush1.msra.mxu0 %v289
        %353 = vmatprep.subr.mxu0 0.0
        %354 = vmatpush1.msra.mxu0 %v290
        %355 = vmatprep.mubr.f32.mxu0 %v257
        %356 = vmatmul.mubr.f32.gmra.mrb[0].mxu0 %v256
        %v357 = vpop.f32.mrb[0].mxu0
        %v358 = vadd.f32 0.0, %v357
        %v359 = vpop.f32.mrb[0].mxu0
        %360 = vdwg.mxu0
        %v361 = vadd.f32 %v258, %v358
        %362 = vst [vmem:[#allocation2] sm:$0xff] %v361
        // Predicated region
        $region41: #{embedding_layer_forward.1} parent=31 // pred_check
          %p363 = pneg %p236
        $region42: #{embedding_layer_forward.1} parent=31 // pred_check_branch
          %365 = sbr.rel (%p363) target = $region44
        $region43: #{embedding_layer_forward.1} parent=31 // pred_region
          %v366 = vld [vmem:[#allocation2] sm:$0xff]
          %v367 = vld [vmem:[%s235] sm:$0x1]
          %v369 = vlaneseq
          %v370 = vshrl.u32 %v369, 7
          %v371 = vsub.s32 0, %v370
          %v372 = vrot.slane %v367, %v371
          %v374 = vmul.f32 %v366, %v372
          %375 = vst [vmem:[%s224] sm:$0xff] %v374
        $region44: #{embedding_layer_forward.1} parent=31 // pred_fallthru
          _
        %s376 = sand.u32 %s127, 1
        %s377 = scalar_lea.sflag [#allocation5], %s376
        %s378 = sand.u32 %s127, 1
        %s379 = smul.addr %s378, 8
        %s380 = scalar_lea.vmem [#allocation6], %s379
        // Predicated region
        $region45: #{embedding_layer_forward.1} parent=31 // pred_check
          %p381 = pneg %p137
        $region46: #{embedding_layer_forward.1} parent=31 // pred_check_branch
          %383 = sbr.rel (%p381) target = $region48
        $region47: #{embedding_layer_forward.1} parent=31 // pred_region
          %s385 = ssub.s32 128, 128
          %386 = vsyncadd %s377, %s385
          %s387 = sadd.s32 %s24, %s23
          %s388 = smul.addr %s387, 128
          %s389 = scalar_lea.hbm %s3, %s388
          %s391 = sshll.u32 %s380, 4
          %s392 = int_to_ptr.vmem [resolvable:$true] %s391
          %394 = dma.vmem_to_hbm [thread:$0]  %s392, 128, %s389, %s377
        $region48: #{embedding_layer_forward.1} parent=31 // pred_fallthru
          _
      $region32: #{embedding_layer_forward.1} parent=5 // pred_fallthru
        _
      %p395 = scmp.le.s32.totalorder 2, %s13
      // Predicated region
      $region49: #{embedding_layer_forward.1} parent=5 // pred_check
        %p396 = pneg %p395
      $region50: #{embedding_layer_forward.1} parent=5 // pred_check_branch
        %398 = sbr.rel (%p396) target = $region52
      $region51: #{embedding_layer_forward.1} parent=5 // pred_region
        %s399 = ssub.s32 %s13, 2
        // Predicated region
        $region53: #{embedding_layer_forward.1} parent=51 // pred_check
          %p400 = pneg %p143
        $region54: #{embedding_layer_forward.1} parent=51 // pred_check_branch
          %402 = sbr.rel (%p400) target = $region56
        $region55: #{embedding_layer_forward.1} parent=51 // pred_region
          %s403 = sand.u32 %s128, 1
          %s404 = scalar_lea.sflag [#allocation5], %s403
          %s405 = sand.u32 %s128, 1
          %s406 = smul.addr %s405, 8
          %s407 = scalar_lea.vmem [#allocation6], %s406
          %408 = dma.done %s404, 128
        $region56: #{embedding_layer_forward.1} parent=51 // pred_fallthru
          _
      $region52: #{embedding_layer_forward.1} parent=5 // pred_fallthru
        _
    $region6: #{embedding_layer_forward.1} parent=1 // loop_footer
      %s17 = sadd.s32 1, %s13
    $region7: #{embedding_layer_forward.1} parent=1 // loop_footer_branch
      %12 = sbr.rel target = $region3
    $region8: #{embedding_layer_forward.1} parent=1 // loop_exit
      _
    %409 = vsyncpa [#allocation4], 1
    %s410 = scalar_lea.sflag [#allocation4], 1
    %411 = vsyncpa %s410, 1
    %412 = vsyncpa [#allocation5], 1
    %s413 = scalar_lea.sflag [#allocation5], 1
    %414 = vsyncpa %s413, 1

</llo_original>
